<compile_context>
chip_gen: v6e
topology: v6e:2x2x1
jax: 0.10.0
libtpu: 0.0.40
codegen_flags: <defaults>
</compile_context>

<pallas_src>
import math
import numpy as np
import jax
import jax.numpy as jnp
from jax.experimental import pallas as pl
from jax.experimental.pallas import tpu as pltpu


RATIO = 2
KSIZE = 41  # gen_mtf default kernel support (41 x 41 taps)

# Nominal Nyquist MTF gains per band (as used by gen_mtf for the Sentinel-2 sensors).
SENSOR_MTF_GAINS = {
    "S2-20": [0.365, 0.33, 0.34, 0.32, 0.205, 0.235],  # 6 bands, ratio == 2
    "S2-60": [0.3175, 0.295],                           # ratio == 6
}


def gen_mtf_taps_1d(ratio, sensor):
    """1-D separable taps per band, (C, K) float32.  outer(taps, taps) reproduces the
    normalized 2-D Gaussian whose frequency response equals the nominal MTF gain at the
    Nyquist frequency 1/(2*ratio)."""
    gains = SENSOR_MTF_GAINS[sensor]
    fnyq = 1.0 / (2.0 * ratio)
    t = np.arange(KSIZE) - (KSIZE - 1) / 2.0
    taps = []
    for g in gains:
        sigma = math.sqrt(-math.log(g) / (2.0 * (math.pi ** 2) * (fnyq ** 2)))
        h = np.exp(-0.5 * (t / sigma) ** 2)
        h = h / h.sum()
        taps.append(h)
    return np.stack(taps, axis=0).astype(np.float32)  # (C, K)


def build_downgrade_matrices(taps, H, W, ratio):
    """Banded matrices implementing 'same'-padded separable cross-correlation fused with
    the 3::ratio subsample:   downgraded[n, c] = A[c] @ x[n, c] @ B[c].

    A: (C, Hs, H), B: (C, W, Ws).  Out-of-range taps (zero padding) are simply dropped."""
    C, K = taps.shape
    ph = (K - 1) // 2
    rows = list(range(3, H, ratio))
    cols = list(range(3, W, ratio))
    Hs, Ws = len(rows), len(cols)
    A = np.zeros((C, Hs, H), np.float32)
    B = np.zeros((C, W, Ws), np.float32)
    for i, r0 in enumerate(rows):
        for kh in range(K):
            r = r0 + kh - ph
            if 0 <= r < H:
                A[:, i, r] = taps[:, kh]
    for j, c0 in enumerate(cols):
        for kw in range(K):
            s = c0 + kw - ph
            if 0 <= s < W:
                B[:, s, j] = taps[:, kw]
    return jnp.asarray(A), jnp.asarray(B), Hs, Ws


# ---------------------------------------------------------------------------
# Fused kernel: per image n -> separable blur + subsample (two MXU matmuls per
# channel) + SAM spectral reductions over C.  Emits the clipped per-pixel cosine.
# ---------------------------------------------------------------------------
def _downgrade_sam_kernel(a_ref, b_ref, x_ref, lab_ref, cos_ref):
    # a_ref: (C, Hs, H)  b_ref: (C, W, Ws)  x_ref: (C, H, W)  lab_ref: (C, Hs, Ws)
    # cos_ref: (Hs, Ws)    [batch dim squeezed by the BlockSpecs]
    C, Hs, _ = a_ref.shape
    Ws = b_ref.shape[2]

    dot_acc = jnp.zeros((Hs, Ws), jnp.float32)
    nx_acc = jnp.zeros((Hs, Ws), jnp.float32)
    ny_acc = jnp.zeros((Hs, Ws), jnp.float32)
    for c in range(C):  # static unroll; C is small (depthwise groups)
        t = jnp.dot(a_ref[c], x_ref[c], preferred_element_type=jnp.float32)   # (Hs, W)  MXU
        dg = jnp.dot(t, b_ref[c], preferred_element_type=jnp.float32)         # (Hs, Ws) MXU
        lab = lab_ref[c]
        dot_acc = dot_acc + dg * lab
        nx_acc = nx_acc + dg * dg
        ny_acc = ny_acc + lab * lab

    denom = jnp.sqrt(nx_acc * ny_acc) + 1e-12
    cos_ref[...] = jnp.clip(dot_acc / denom, -1.0, 1.0)


def repro_sam(outputs, labels, a_mat, b_mat):
    """outputs: (N, C, H, W); labels: (N, C, Hs, Ws) with Hs = len(range(3, H, ratio)).
    Returns the mean spectral angle (degrees) of downgrade(outputs) vs labels."""
    N, C, H, W = outputs.shape
    _, Hs, _ = a_mat.shape
    Ws = b_mat.shape[2]

    cos = pl.pallas_call(
        _downgrade_sam_kernel,
        out_shape=jax.ShapeDtypeStruct((N, Hs, Ws), jnp.float32),
        grid=(N,),
        in_specs=[
            pl.BlockSpec((C, Hs, H), lambda n: (0, 0, 0)),       # A, kept resident
            pl.BlockSpec((C, W, Ws), lambda n: (0, 0, 0)),       # B, kept resident
            pl.BlockSpec((None, C, H, W), lambda n: (n, 0, 0, 0)),
            pl.BlockSpec((None, C, Hs, Ws), lambda n: (n, 0, 0, 0)),
        ],
        out_specs=pl.BlockSpec((None, Hs, Ws), lambda n: (n, 0, 0)),
        compiler_params=pltpu.CompilerParams(
            dimension_semantics=("parallel",)),
    )(a_mat, b_mat, outputs.astype(jnp.float32), labels.astype(jnp.float32))

    ang = jnp.arccos(cos)                    # tiny (N, Hs, Ws) map; see TODO(synk) above
    return jnp.mean(ang) * (180.0 / math.pi)


if __name__ == "__main__":
    key = jax.random.PRNGKey(0)
    k1, k2 = jax.random.split(key)

    ratio = RATIO
    sensor = "S2-20" if ratio == 2 else "S2-60"
    taps = gen_mtf_taps_1d(ratio, sensor)           # (6, 41), deterministic

    N, H, W = 2, 16, 16
    C = taps.shape[0]
    a_mat, b_mat, Hs, Ws = build_downgrade_matrices(taps, H, W, ratio)   # Hs = Ws = 7

    outputs = jax.random.uniform(k1, (N, C, H, W), dtype=jnp.float32)
    labels = jax.random.uniform(k2, (N, C, Hs, Ws), dtype=jnp.float32)

    result = repro_sam(outputs, labels, a_mat, b_mat)
    jax.block_until_ready(result)
    print("KERNEL_OK")
</pallas_src>

<mosaic_0001>
module attributes {stable_mosaic.version = 11 : i64} {
  func.func @_downgrade_sam_kernel(%arg0: i32, %arg1: memref<6x7x16xf32, #tpu.memory_space<vmem>>, %arg2: memref<6x16x7xf32, #tpu.memory_space<vmem>>, %arg3: memref<1x6x16x16xf32, #tpu.memory_space<vmem>>, %arg4: memref<1x6x7x7xf32, #tpu.memory_space<vmem>>, %arg5: memref<1x7x7xf32, #tpu.memory_space<vmem>>) attributes {dimension_semantics = [#tpu.dimension_semantics<parallel>], iteration_bounds = array<i64: 2>, scalar_prefetch = 0 : i64, scratch_operands = 0 : i64, tpu.core_type = #tpu.core_type<tc>, window_params = [{pipeline_mode = #tpu.pipeline_mode<synchronous>, transform_indices = @transform_0, window_bounds = array<i64: 6, 7, 16>}, {pipeline_mode = #tpu.pipeline_mode<synchronous>, transform_indices = @transform_1, window_bounds = array<i64: 6, 16, 7>}, {transform_indices = @transform_2, window_bounds = array<i64: 1, 6, 16, 16>}, {transform_indices = @transform_3, window_bounds = array<i64: 1, 6, 7, 7>}, {transform_indices = @transform_4, window_bounds = array<i64: 1, 7, 7>}]} {
    %cst = arith.constant 0.000000e+00 : f32
    %0 = vector.broadcast %cst : f32 to vector<7x7xf32>
    %cst_0 = arith.constant 0.000000e+00 : f32
    %1 = vector.broadcast %cst_0 : f32 to vector<7x7xf32>
    %cst_1 = arith.constant 0.000000e+00 : f32
    %2 = vector.broadcast %cst_1 : f32 to vector<7x7xf32>
    %c0 = arith.constant 0 : index
    %c0_2 = arith.constant 0 : index
    %c0_3 = arith.constant 0 : index
    %3 = vector.load %arg1[%c0, %c0_2, %c0_3] : memref<6x7x16xf32, #tpu.memory_space<vmem>>, vector<1x7x16xf32>
    %4 = vector.shape_cast %3 : vector<1x7x16xf32> to vector<7x16xf32>
    %c0_4 = arith.constant 0 : index
    %c0_5 = arith.constant 0 : index
    %c0_6 = arith.constant 0 : index
    %c0_7 = arith.constant 0 : index
    %5 = vector.load %arg3[%c0_4, %c0_5, %c0_6, %c0_7] : memref<1x6x16x16xf32, #tpu.memory_space<vmem>>, vector<1x1x16x16xf32>
    %6 = vector.shape_cast %5 : vector<1x1x16x16xf32> to vector<16x16xf32>
    %cst_8 = arith.constant dense<0.000000e+00> : vector<7x16xf32>
    %7 = tpu.matmul %4, %6, %cst_8 {dimension_numbers = #tpu.dot_dimension_numbers<[1], [0], [0], [1], [0, 0, 1, 1], [], []>} : vector<7x16xf32>, vector<16x16xf32>, vector<7x16xf32> -> vector<7x16xf32>
    %c0_9 = arith.constant 0 : index
    %c0_10 = arith.constant 0 : index
    %c0_11 = arith.constant 0 : index
    %8 = vector.load %arg2[%c0_9, %c0_10, %c0_11] : memref<6x16x7xf32, #tpu.memory_space<vmem>>, vector<1x16x7xf32>
    %9 = vector.shape_cast %8 : vector<1x16x7xf32> to vector<16x7xf32>
    %cst_12 = arith.constant dense<0.000000e+00> : vector<7x7xf32>
    %10 = tpu.matmul %7, %9, %cst_12 {dimension_numbers = #tpu.dot_dimension_numbers<[1], [0], [0], [1], [0, 0, 1, 1], [], []>} : vector<7x16xf32>, vector<16x7xf32>, vector<7x7xf32> -> vector<7x7xf32>
    %c0_13 = arith.constant 0 : index
    %c0_14 = arith.constant 0 : index
    %c0_15 = arith.constant 0 : index
    %c0_16 = arith.constant 0 : index
    %11 = vector.load %arg4[%c0_13, %c0_14, %c0_15, %c0_16] : memref<1x6x7x7xf32, #tpu.memory_space<vmem>>, vector<1x1x7x7xf32>
    %12 = vector.shape_cast %11 : vector<1x1x7x7xf32> to vector<7x7xf32>
    %13 = arith.mulf %10, %12 : vector<7x7xf32>
    %14 = arith.addf %0, %13 : vector<7x7xf32>
    %15 = arith.mulf %10, %10 : vector<7x7xf32>
    %16 = arith.addf %1, %15 : vector<7x7xf32>
    %17 = arith.mulf %12, %12 : vector<7x7xf32>
    %18 = arith.addf %2, %17 : vector<7x7xf32>
    %c1 = arith.constant 1 : index
    %c0_17 = arith.constant 0 : index
    %c0_18 = arith.constant 0 : index
    %19 = vector.load %arg1[%c1, %c0_17, %c0_18] : memref<6x7x16xf32, #tpu.memory_space<vmem>>, vector<1x7x16xf32>
    %20 = vector.shape_cast %19 : vector<1x7x16xf32> to vector<7x16xf32>
    %c0_19 = arith.constant 0 : index
    %c1_20 = arith.constant 1 : index
    %c0_21 = arith.constant 0 : index
    %c0_22 = arith.constant 0 : index
    %21 = vector.load %arg3[%c0_19, %c1_20, %c0_21, %c0_22] : memref<1x6x16x16xf32, #tpu.memory_space<vmem>>, vector<1x1x16x16xf32>
    %22 = vector.shape_cast %21 : vector<1x1x16x16xf32> to vector<16x16xf32>
    %cst_23 = arith.constant dense<0.000000e+00> : vector<7x16xf32>
    %23 = tpu.matmul %20, %22, %cst_23 {dimension_numbers = #tpu.dot_dimension_numbers<[1], [0], [0], [1], [0, 0, 1, 1], [], []>} : vector<7x16xf32>, vector<16x16xf32>, vector<7x16xf32> -> vector<7x16xf32>
    %c1_24 = arith.constant 1 : index
    %c0_25 = arith.constant 0 : index
    %c0_26 = arith.constant 0 : index
    %24 = vector.load %arg2[%c1_24, %c0_25, %c0_26] : memref<6x16x7xf32, #tpu.memory_space<vmem>>, vector<1x16x7xf32>
    %25 = vector.shape_cast %24 : vector<1x16x7xf32> to vector<16x7xf32>
    %cst_27 = arith.constant dense<0.000000e+00> : vector<7x7xf32>
    %26 = tpu.matmul %23, %25, %cst_27 {dimension_numbers = #tpu.dot_dimension_numbers<[1], [0], [0], [1], [0, 0, 1, 1], [], []>} : vector<7x16xf32>, vector<16x7xf32>, vector<7x7xf32> -> vector<7x7xf32>
    %c0_28 = arith.constant 0 : index
    %c1_29 = arith.constant 1 : index
    %c0_30 = arith.constant 0 : index
    %c0_31 = arith.constant 0 : index
    %27 = vector.load %arg4[%c0_28, %c1_29, %c0_30, %c0_31] : memref<1x6x7x7xf32, #tpu.memory_space<vmem>>, vector<1x1x7x7xf32>
    %28 = vector.shape_cast %27 : vector<1x1x7x7xf32> to vector<7x7xf32>
    %29 = arith.mulf %26, %28 : vector<7x7xf32>
    %30 = arith.addf %14, %29 : vector<7x7xf32>
    %31 = arith.mulf %26, %26 : vector<7x7xf32>
    %32 = arith.addf %16, %31 : vector<7x7xf32>
    %33 = arith.mulf %28, %28 : vector<7x7xf32>
    %34 = arith.addf %18, %33 : vector<7x7xf32>
    %c2 = arith.constant 2 : index
    %c0_32 = arith.constant 0 : index
    %c0_33 = arith.constant 0 : index
    %35 = vector.load %arg1[%c2, %c0_32, %c0_33] : memref<6x7x16xf32, #tpu.memory_space<vmem>>, vector<1x7x16xf32>
    %36 = vector.shape_cast %35 : vector<1x7x16xf32> to vector<7x16xf32>
    %c0_34 = arith.constant 0 : index
    %c2_35 = arith.constant 2 : index
    %c0_36 = arith.constant 0 : index
    %c0_37 = arith.constant 0 : index
    %37 = vector.load %arg3[%c0_34, %c2_35, %c0_36, %c0_37] : memref<1x6x16x16xf32, #tpu.memory_space<vmem>>, vector<1x1x16x16xf32>
    %38 = vector.shape_cast %37 : vector<1x1x16x16xf32> to vector<16x16xf32>
    %cst_38 = arith.constant dense<0.000000e+00> : vector<7x16xf32>
    %39 = tpu.matmul %36, %38, %cst_38 {dimension_numbers = #tpu.dot_dimension_numbers<[1], [0], [0], [1], [0, 0, 1, 1], [], []>} : vector<7x16xf32>, vector<16x16xf32>, vector<7x16xf32> -> vector<7x16xf32>
    %c2_39 = arith.constant 2 : index
    %c0_40 = arith.constant 0 : index
    %c0_41 = arith.constant 0 : index
    %40 = vector.load %arg2[%c2_39, %c0_40, %c0_41] : memref<6x16x7xf32, #tpu.memory_space<vmem>>, vector<1x16x7xf32>
    %41 = vector.shape_cast %40 : vector<1x16x7xf32> to vector<16x7xf32>
    %cst_42 = arith.constant dense<0.000000e+00> : vector<7x7xf32>
    %42 = tpu.matmul %39, %41, %cst_42 {dimension_numbers = #tpu.dot_dimension_numbers<[1], [0], [0], [1], [0, 0, 1, 1], [], []>} : vector<7x16xf32>, vector<16x7xf32>, vector<7x7xf32> -> vector<7x7xf32>
    %c0_43 = arith.constant 0 : index
    %c2_44 = arith.constant 2 : index
    %c0_45 = arith.constant 0 : index
    %c0_46 = arith.constant 0 : index
    %43 = vector.load %arg4[%c0_43, %c2_44, %c0_45, %c0_46] : memref<1x6x7x7xf32, #tpu.memory_space<vmem>>, vector<1x1x7x7xf32>
    %44 = vector.shape_cast %43 : vector<1x1x7x7xf32> to vector<7x7xf32>
    %45 = arith.mulf %42, %44 : vector<7x7xf32>
    %46 = arith.addf %30, %45 : vector<7x7xf32>
    %47 = arith.mulf %42, %42 : vector<7x7xf32>
    %48 = arith.addf %32, %47 : vector<7x7xf32>
    %49 = arith.mulf %44, %44 : vector<7x7xf32>
    %50 = arith.addf %34, %49 : vector<7x7xf32>
    %c3 = arith.constant 3 : index
    %c0_47 = arith.constant 0 : index
    %c0_48 = arith.constant 0 : index
    %51 = vector.load %arg1[%c3, %c0_47, %c0_48] : memref<6x7x16xf32, #tpu.memory_space<vmem>>, vector<1x7x16xf32>
    %52 = vector.shape_cast %51 : vector<1x7x16xf32> to vector<7x16xf32>
    %c0_49 = arith.constant 0 : index
    %c3_50 = arith.constant 3 : index
    %c0_51 = arith.constant 0 : index
    %c0_52 = arith.constant 0 : index
    %53 = vector.load %arg3[%c0_49, %c3_50, %c0_51, %c0_52] : memref<1x6x16x16xf32, #tpu.memory_space<vmem>>, vector<1x1x16x16xf32>
    %54 = vector.shape_cast %53 : vector<1x1x16x16xf32> to vector<16x16xf32>
    %cst_53 = arith.constant dense<0.000000e+00> : vector<7x16xf32>
    %55 = tpu.matmul %52, %54, %cst_53 {dimension_numbers = #tpu.dot_dimension_numbers<[1], [0], [0], [1], [0, 0, 1, 1], [], []>} : vector<7x16xf32>, vector<16x16xf32>, vector<7x16xf32> -> vector<7x16xf32>
    %c3_54 = arith.constant 3 : index
    %c0_55 = arith.constant 0 : index
    %c0_56 = arith.constant 0 : index
    %56 = vector.load %arg2[%c3_54, %c0_55, %c0_56] : memref<6x16x7xf32, #tpu.memory_space<vmem>>, vector<1x16x7xf32>
    %57 = vector.shape_cast %56 : vector<1x16x7xf32> to vector<16x7xf32>
    %cst_57 = arith.constant dense<0.000000e+00> : vector<7x7xf32>
    %58 = tpu.matmul %55, %57, %cst_57 {dimension_numbers = #tpu.dot_dimension_numbers<[1], [0], [0], [1], [0, 0, 1, 1], [], []>} : vector<7x16xf32>, vector<16x7xf32>, vector<7x7xf32> -> vector<7x7xf32>
    %c0_58 = arith.constant 0 : index
    %c3_59 = arith.constant 3 : index
    %c0_60 = arith.constant 0 : index
    %c0_61 = arith.constant 0 : index
    %59 = vector.load %arg4[%c0_58, %c3_59, %c0_60, %c0_61] : memref<1x6x7x7xf32, #tpu.memory_space<vmem>>, vector<1x1x7x7xf32>
    %60 = vector.shape_cast %59 : vector<1x1x7x7xf32> to vector<7x7xf32>
    %61 = arith.mulf %58, %60 : vector<7x7xf32>
    %62 = arith.addf %46, %61 : vector<7x7xf32>
    %63 = arith.mulf %58, %58 : vector<7x7xf32>
    %64 = arith.addf %48, %63 : vector<7x7xf32>
    %65 = arith.mulf %60, %60 : vector<7x7xf32>
    %66 = arith.addf %50, %65 : vector<7x7xf32>
    %c4 = arith.constant 4 : index
    %c0_62 = arith.constant 0 : index
    %c0_63 = arith.constant 0 : index
    %67 = vector.load %arg1[%c4, %c0_62, %c0_63] : memref<6x7x16xf32, #tpu.memory_space<vmem>>, vector<1x7x16xf32>
    %68 = vector.shape_cast %67 : vector<1x7x16xf32> to vector<7x16xf32>
    %c0_64 = arith.constant 0 : index
    %c4_65 = arith.constant 4 : index
    %c0_66 = arith.constant 0 : index
    %c0_67 = arith.constant 0 : index
    %69 = vector.load %arg3[%c0_64, %c4_65, %c0_66, %c0_67] : memref<1x6x16x16xf32, #tpu.memory_space<vmem>>, vector<1x1x16x16xf32>
    %70 = vector.shape_cast %69 : vector<1x1x16x16xf32> to vector<16x16xf32>
    %cst_68 = arith.constant dense<0.000000e+00> : vector<7x16xf32>
    %71 = tpu.matmul %68, %70, %cst_68 {dimension_numbers = #tpu.dot_dimension_numbers<[1], [0], [0], [1], [0, 0, 1, 1], [], []>} : vector<7x16xf32>, vector<16x16xf32>, vector<7x16xf32> -> vector<7x16xf32>
    %c4_69 = arith.constant 4 : index
    %c0_70 = arith.constant 0 : index
    %c0_71 = arith.constant 0 : index
    %72 = vector.load %arg2[%c4_69, %c0_70, %c0_71] : memref<6x16x7xf32, #tpu.memory_space<vmem>>, vector<1x16x7xf32>
    %73 = vector.shape_cast %72 : vector<1x16x7xf32> to vector<16x7xf32>
    %cst_72 = arith.constant dense<0.000000e+00> : vector<7x7xf32>
    %74 = tpu.matmul %71, %73, %cst_72 {dimension_numbers = #tpu.dot_dimension_numbers<[1], [0], [0], [1], [0, 0, 1, 1], [], []>} : vector<7x16xf32>, vector<16x7xf32>, vector<7x7xf32> -> vector<7x7xf32>
    %c0_73 = arith.constant 0 : index
    %c4_74 = arith.constant 4 : index
    %c0_75 = arith.constant 0 : index
    %c0_76 = arith.constant 0 : index
    %75 = vector.load %arg4[%c0_73, %c4_74, %c0_75, %c0_76] : memref<1x6x7x7xf32, #tpu.memory_space<vmem>>, vector<1x1x7x7xf32>
    %76 = vector.shape_cast %75 : vector<1x1x7x7xf32> to vector<7x7xf32>
    %77 = arith.mulf %74, %76 : vector<7x7xf32>
    %78 = arith.addf %62, %77 : vector<7x7xf32>
    %79 = arith.mulf %74, %74 : vector<7x7xf32>
    %80 = arith.addf %64, %79 : vector<7x7xf32>
    %81 = arith.mulf %76, %76 : vector<7x7xf32>
    %82 = arith.addf %66, %81 : vector<7x7xf32>
    %c5 = arith.constant 5 : index
    %c0_77 = arith.constant 0 : index
    %c0_78 = arith.constant 0 : index
    %83 = vector.load %arg1[%c5, %c0_77, %c0_78] : memref<6x7x16xf32, #tpu.memory_space<vmem>>, vector<1x7x16xf32>
    %84 = vector.shape_cast %83 : vector<1x7x16xf32> to vector<7x16xf32>
    %c0_79 = arith.constant 0 : index
    %c5_80 = arith.constant 5 : index
    %c0_81 = arith.constant 0 : index
    %c0_82 = arith.constant 0 : index
    %85 = vector.load %arg3[%c0_79, %c5_80, %c0_81, %c0_82] : memref<1x6x16x16xf32, #tpu.memory_space<vmem>>, vector<1x1x16x16xf32>
    %86 = vector.shape_cast %85 : vector<1x1x16x16xf32> to vector<16x16xf32>
    %cst_83 = arith.constant dense<0.000000e+00> : vector<7x16xf32>
    %87 = tpu.matmul %84, %86, %cst_83 {dimension_numbers = #tpu.dot_dimension_numbers<[1], [0], [0], [1], [0, 0, 1, 1], [], []>} : vector<7x16xf32>, vector<16x16xf32>, vector<7x16xf32> -> vector<7x16xf32>
    %c5_84 = arith.constant 5 : index
    %c0_85 = arith.constant 0 : index
    %c0_86 = arith.constant 0 : index
    %88 = vector.load %arg2[%c5_84, %c0_85, %c0_86] : memref<6x16x7xf32, #tpu.memory_space<vmem>>, vector<1x16x7xf32>
    %89 = vector.shape_cast %88 : vector<1x16x7xf32> to vector<16x7xf32>
    %cst_87 = arith.constant dense<0.000000e+00> : vector<7x7xf32>
    %90 = tpu.matmul %87, %89, %cst_87 {dimension_numbers = #tpu.dot_dimension_numbers<[1], [0], [0], [1], [0, 0, 1, 1], [], []>} : vector<7x16xf32>, vector<16x7xf32>, vector<7x7xf32> -> vector<7x7xf32>
    %c0_88 = arith.constant 0 : index
    %c5_89 = arith.constant 5 : index
    %c0_90 = arith.constant 0 : index
    %c0_91 = arith.constant 0 : index
    %91 = vector.load %arg4[%c0_88, %c5_89, %c0_90, %c0_91] : memref<1x6x7x7xf32, #tpu.memory_space<vmem>>, vector<1x1x7x7xf32>
    %92 = vector.shape_cast %91 : vector<1x1x7x7xf32> to vector<7x7xf32>
    %93 = arith.mulf %90, %92 : vector<7x7xf32>
    %94 = arith.addf %78, %93 : vector<7x7xf32>
    %95 = arith.mulf %90, %90 : vector<7x7xf32>
    %96 = arith.addf %80, %95 : vector<7x7xf32>
    %97 = arith.mulf %92, %92 : vector<7x7xf32>
    %98 = arith.addf %82, %97 : vector<7x7xf32>
    %99 = arith.mulf %96, %98 : vector<7x7xf32>
    %100 = math.sqrt %99 : vector<7x7xf32>
    %cst_92 = arith.constant 9.99999996E-13 : f32
    %101 = vector.broadcast %cst_92 : f32 to vector<7x7xf32>
    %102 = arith.addf %100, %101 : vector<7x7xf32>
    %103 = arith.divf %94, %102 : vector<7x7xf32>
    %cst_93 = arith.constant -1.000000e+00 : f32
    %cst_94 = arith.constant 1.000000e+00 : f32
    %104 = vector.broadcast %cst_93 : f32 to vector<7x7xf32>
    %105 = arith.maximumf %104, %103 : vector<7x7xf32>
    %106 = vector.broadcast %cst_94 : f32 to vector<7x7xf32>
    %107 = arith.minimumf %106, %105 : vector<7x7xf32>
    %c0_95 = arith.constant 0 : index
    %c0_96 = arith.constant 0 : index
    %c0_97 = arith.constant 0 : index
    %108 = vector.load %arg5[%c0_95, %c0_96, %c0_97] : memref<1x7x7xf32, #tpu.memory_space<vmem>>, vector<1x7x7xf32>
    %109 = vector.shape_cast %108 : vector<1x7x7xf32> to vector<7x7xf32>
    %110 = vector.shape_cast %107 : vector<7x7xf32> to vector<1x7x7xf32>
    tpu.vector_store %arg5[%c0_95, %c0_96, %c0_97], %110 {strides = array<i32>} : memref<1x7x7xf32, #tpu.memory_space<vmem>>, vector<1x7x7xf32>,
    return
  }
  func.func @transform_0(%arg0: i32) -> (i32, i32, i32) {
    %c0_i32 = arith.constant 0 : i32
    %c0_i32_0 = arith.constant 0 : i32
    %c0_i32_1 = arith.constant 0 : i32
    %c0_i32_2 = arith.constant 0 : i32
    return %c0_i32, %c0_i32_0, %c0_i32_1 : i32, i32, i32
  }
  func.func @transform_1(%arg0: i32) -> (i32, i32, i32) {
    %c0_i32 = arith.constant 0 : i32
    %c0_i32_0 = arith.constant 0 : i32
    %c0_i32_1 = arith.constant 0 : i32
    %c0_i32_2 = arith.constant 0 : i32
    return %c0_i32, %c0_i32_0, %c0_i32_1 : i32, i32, i32
  }
  func.func @transform_2(%arg0: i32) -> (i32, i32, i32, i32) {
    %c0_i32 = arith.constant 0 : i32
    %c0_i32_0 = arith.constant 0 : i32
    %c0_i32_1 = arith.constant 0 : i32
    %c0_i32_2 = arith.constant 0 : i32
    return %arg0, %c0_i32, %c0_i32_0, %c0_i32_1 : i32, i32, i32, i32
  }
  func.func @transform_3(%arg0: i32) -> (i32, i32, i32, i32) {
    %c0_i32 = arith.constant 0 : i32
    %c0_i32_0 = arith.constant 0 : i32
    %c0_i32_1 = arith.constant 0 : i32
    %c0_i32_2 = arith.constant 0 : i32
    return %arg0, %c0_i32, %c0_i32_0, %c0_i32_1 : i32, i32, i32, i32
  }
  func.func @transform_4(%arg0: i32) -> (i32, i32, i32) {
    %c0_i32 = arith.constant 0 : i32
    %c0_i32_0 = arith.constant 0 : i32
    %c0_i32_1 = arith.constant 0 : i32
    return %arg0, %c0_i32, %c0_i32_0 : i32, i32, i32
  }
}

</mosaic_0001>

<llo_original>
// kernel: tpu_custom_call.1
$region0: #{tpu_custom_call.1}
  #allocation0 [shape = 'u32[]', space=smem, size = 0x4, offset = 0x4, fixed_abs, tag = 'smem constant byte address 0x4 - core index']
  #allocation1 [shape = 'u32[144,128]{1,0:T(1,128)}', space=vmem, size = 0x12000, scoped, tag = 'internal scratch']
  %s0 = inlined_call_operand.vmem [shape: f32[6,7,16], index: 0, kind: input, shape index: {}]
  %s1 = inlined_call_operand.vmem [shape: f32[6,16,7], index: 1, kind: input, shape index: {}]
  %s2 = inlined_call_operand.vmem [shape: f32[2,6,16,16], index: 2, kind: input, shape index: {}]
  %s3 = inlined_call_operand.vmem [shape: f32[2,6,7,7], index: 3, kind: input, shape index: {}]
  %s4 = inlined_call_operand.vmem [shape: f32[2,7,7], index: 4, kind: output, shape index: {}]
  %s5 = sld [smem:[#allocation0]]
  $region49: #{tpu_custom_call.1} parent=0
    _
  %s7 = ssub.s32 1, %s5
  %s8 = scalar_select 0, %s7, %s5
  loop: start=0, step=1, limit=4
  $region2: #{tpu_custom_call.1} parent=0 // loop_pre_header
    _
  $region3: #{tpu_custom_call.1} parent=0 // loop_header
    %s10 = sphi 0, %s14
    %p11 = scmp.ge.s32.totalorder %s10, 4
    %s18 = sphi 0, %s18
    %s20 = sphi 0, %s18
    %s21 = sphi 0, %s20
    %s35 = sphi 0, %s21
    %s39 = sphi 0, %s39
    %s41 = sphi 0, %s39
    %s42 = sphi 0, %s41
    %s56 = sphi 0, %s42
    %s62 = sphi 0, %s64
    %s65 = sphi 0, %s62
    %s66 = sphi 0, %s65
    %s82 = sphi 0, %s66
    %s88 = sphi 0, %s90
    %s91 = sphi 0, %s88
    %s92 = sphi 0, %s91
    %s108 = sphi 0, %s92
    %s114 = sphi 0, %s116
    %s117 = sphi 0, %s114
    %s118 = sphi 0, %s117
    %s134 = sphi 0, %s118
  $region4: #{tpu_custom_call.1} parent=0 // loop_header_branch
    %13 = sbr.rel (%p11) target = $region8
  $region5: #{tpu_custom_call.1} parent=0 // loop_body
    %s15 = ssub.s32 %s10, 1
    %s16 = ssub.s32 %s10, 2
    %s17 = sadd.s32 %s10, 1
    %s19 = sadd.s32 %s18, 1
    %p22 = scmp.eq.s32.totalorder %s10, 1
    %p23 = scmp.ne.s32.totalorder %s18, %s20
    %p24 = scmp.eq.s32.totalorder %s10, 0
    %p25 = por %p23, %p24
    %p26 = scmp.ne.s32.totalorder %s18, %s20
    %p27 = scmp.eq.s32.totalorder %s15, 1
    %p28 = por %p26, %p27
    %p29 = scmp.ne.s32.totalorder %s20, %s21
    %p30 = scmp.eq.s32.totalorder %s15, 0
    %p31 = por %p29, %p30
    %p32 = scmp.ne.s32.totalorder %s20, %s21
    %p33 = scmp.eq.s32.totalorder %s16, 1
    %p34 = por %p32, %p33
    %p36 = scmp.ne.s32.totalorder %s21, %s35
    %p37 = scmp.eq.s32.totalorder %s16, 0
    %p38 = por %p36, %p37
    %s40 = sadd.s32 %s39, 1
    %p43 = scmp.eq.s32.totalorder %s10, 1
    %p44 = scmp.ne.s32.totalorder %s39, %s41
    %p45 = scmp.eq.s32.totalorder %s10, 0
    %p46 = por %p44, %p45
    %p47 = scmp.ne.s32.totalorder %s39, %s41
    %p48 = scmp.eq.s32.totalorder %s15, 1
    %p49 = por %p47, %p48
    %p50 = scmp.ne.s32.totalorder %s41, %s42
    %p51 = scmp.eq.s32.totalorder %s15, 0
    %p52 = por %p50, %p51
    %p53 = scmp.ne.s32.totalorder %s41, %s42
    %p54 = scmp.eq.s32.totalorder %s16, 1
    %p55 = por %p53, %p54
    %p57 = scmp.ne.s32.totalorder %s42, %s56
    %p58 = scmp.eq.s32.totalorder %s16, 0
    %p59 = por %p57, %p58
    %s60 = ssub.s32 %s10, %s17
    %p61 = scmp.eq.s32.totalorder %s60, 0
    %s63 = sadd.s32 %s62, 1
    %s64 = scalar_select %p61, %s62, %s63
    %p67 = pneg %p61
    %p68 = scmp.eq.s32.totalorder %s10, 1
    %p69 = por %p67, %p68
    %p70 = scmp.ne.s32.totalorder %s62, %s65
    %p71 = scmp.eq.s32.totalorder %s10, 0
    %p72 = por %p70, %p71
    %p73 = scmp.ne.s32.totalorder %s62, %s65
    %p74 = scmp.eq.s32.totalorder %s15, 1
    %p75 = por %p73, %p74
    %p76 = scmp.ne.s32.totalorder %s65, %s66
    %p77 = scmp.eq.s32.totalorder %s15, 0
    %p78 = por %p76, %p77
    %p79 = scmp.ne.s32.totalorder %s65, %s66
    %p80 = scmp.eq.s32.totalorder %s16, 1
    %p81 = por %p79, %p80
    %p83 = scmp.ne.s32.totalorder %s66, %s82
    %p84 = scmp.eq.s32.totalorder %s16, 0
    %p85 = por %p83, %p84
    %s86 = ssub.s32 %s10, %s17
    %p87 = scmp.eq.s32.totalorder %s86, 0
    %s89 = sadd.s32 %s88, 1
    %s90 = scalar_select %p87, %s88, %s89
    %p93 = pneg %p87
    %p94 = scmp.eq.s32.totalorder %s10, 1
    %p95 = por %p93, %p94
    %p96 = scmp.ne.s32.totalorder %s88, %s91
    %p97 = scmp.eq.s32.totalorder %s10, 0
    %p98 = por %p96, %p97
    %p99 = scmp.ne.s32.totalorder %s88, %s91
    %p100 = scmp.eq.s32.totalorder %s15, 1
    %p101 = por %p99, %p100
    %p102 = scmp.ne.s32.totalorder %s91, %s92
    %p103 = scmp.eq.s32.totalorder %s15, 0
    %p104 = por %p102, %p103
    %p105 = scmp.ne.s32.totalorder %s91, %s92
    %p106 = scmp.eq.s32.totalorder %s16, 1
    %p107 = por %p105, %p106
    %p109 = scmp.ne.s32.totalorder %s92, %s108
    %p110 = scmp.eq.s32.totalorder %s16, 0
    %p111 = por %p109, %p110
    %s112 = ssub.s32 %s10, %s17
    %p113 = scmp.eq.s32.totalorder %s112, 0
    %s115 = sadd.s32 %s114, 1
    %s116 = scalar_select %p113, %s114, %s115
    %p119 = pneg %p113
    %p120 = scmp.eq.s32.totalorder %s10, 1
    %p121 = por %p119, %p120
    %p122 = scmp.ne.s32.totalorder %s114, %s117
    %p123 = scmp.eq.s32.totalorder %s10, 0
    %p124 = por %p122, %p123
    %p125 = scmp.ne.s32.totalorder %s114, %s117
    %p126 = scmp.eq.s32.totalorder %s15, 1
    %p127 = por %p125, %p126
    %p128 = scmp.ne.s32.totalorder %s117, %s118
    %p129 = scmp.eq.s32.totalorder %s15, 0
    %p130 = por %p128, %p129
    %p131 = scmp.ne.s32.totalorder %s117, %s118
    %p132 = scmp.eq.s32.totalorder %s16, 1
    %p133 = por %p131, %p132
    %p135 = scmp.ne.s32.totalorder %s118, %s134
    %p136 = scmp.eq.s32.totalorder %s16, 0
    %p137 = por %p135, %p136
    %p138 = scmp.le.s32.totalorder 1, %s10
    %p139 = scmp.lt.s32.totalorder %s10, 3
    %p140 = pnand %p138, %p139
    %p141 = pneg %p140
    // Predicated region
    $region9: #{tpu_custom_call.1} parent=5 // pred_check
      _
    $region10: #{tpu_custom_call.1} parent=5 // pred_check_branch
      %143 = sbr.rel (%p140) target = $region12
    $region11: #{tpu_custom_call.1} parent=5 // pred_region
      %s144 = ssub.s32 %s10, 1
      // Predicated region
      $region13: #{tpu_custom_call.1} parent=11 // pred_check
        %p145 = pneg %p31
      $region14: #{tpu_custom_call.1} parent=11 // pred_check_branch
        %147 = sbr.rel (%p145) target = $region16
      $region15: #{tpu_custom_call.1} parent=11 // pred_region
        _
      $region16: #{tpu_custom_call.1} parent=11 // pred_fallthru
        _
      // Predicated region
      $region17: #{tpu_custom_call.1} parent=11 // pred_check
        %p148 = pneg %p52
      $region18: #{tpu_custom_call.1} parent=11 // pred_check_branch
        %150 = sbr.rel (%p148) target = $region20
      $region19: #{tpu_custom_call.1} parent=11 // pred_region
        _
      $region20: #{tpu_custom_call.1} parent=11 // pred_fallthru
        _
    $region12: #{tpu_custom_call.1} parent=5 // pred_fallthru
      _
    %p151 = scmp.lt.s32.totalorder %s10, 2
    // Predicated region
    $region21: #{tpu_custom_call.1} parent=5 // pred_check
      %p152 = pneg %p151
    $region22: #{tpu_custom_call.1} parent=5 // pred_check_branch
      %154 = sbr.rel (%p152) target = $region24
    $region23: #{tpu_custom_call.1} parent=5 // pred_region
      // Predicated region
      $region25: #{tpu_custom_call.1} parent=23 // pred_check
        %p155 = pneg %p72
      $region26: #{tpu_custom_call.1} parent=23 // pred_check_branch
        %157 = sbr.rel (%p155) target = $region28
      $region27: #{tpu_custom_call.1} parent=23 // pred_region
        %p158 = scmp.lt.s32.totalorder %s10, 1
        %s159 = scalar_select %p158, %s10, 1
        %s160 = smul.addr %s159, 12
        %s161 = smul.addr %s160, 8
        %s162 = scalar_lea.vmem %s2, %s161
      $region28: #{tpu_custom_call.1} parent=23 // pred_fallthru
        _
      // Predicated region
      $region29: #{tpu_custom_call.1} parent=23 // pred_check
        %p163 = pneg %p98
      $region30: #{tpu_custom_call.1} parent=23 // pred_check_branch
        %165 = sbr.rel (%p163) target = $region32
      $region31: #{tpu_custom_call.1} parent=23 // pred_region
        %p166 = scmp.lt.s32.totalorder %s10, 1
        %s167 = scalar_select %p166, %s10, 1
        %s168 = smul.addr %s167, 6
        %s169 = smul.addr %s168, 8
        %s170 = scalar_lea.vmem %s3, %s169
      $region32: #{tpu_custom_call.1} parent=23 // pred_fallthru
        _
    $region24: #{tpu_custom_call.1} parent=5 // pred_fallthru
      _
    %p171 = scmp.le.s32.totalorder 1, %s10
    %p172 = scmp.lt.s32.totalorder %s10, 3
    %p173 = pnand %p171, %p172
    %p174 = pneg %p173
    // Predicated region
    $region33: #{tpu_custom_call.1} parent=5 // pred_check
      _
    $region34: #{tpu_custom_call.1} parent=5 // pred_check_branch
      %176 = sbr.rel (%p173) target = $region36
    $region35: #{tpu_custom_call.1} parent=5 // pred_region
      %s177 = ssub.s32 %s10, 1
      %p178 = pneg %p31
      %p179 = pneg %p28
      %p180 = pneg %p52
      %p181 = pneg %p49
      %p182 = scmp.lt.s32.totalorder %s15, 1
      %s183 = scalar_select %p182, %s15, 1
      %s184 = smul.addr %s183, 12
      %s185 = smul.addr %s184, 8
      %s186 = scalar_lea.vmem %s2, %s185
      %p187 = pneg %p78
      %p188 = pneg %p75
      %p189 = scmp.lt.s32.totalorder %s15, 1
      %s190 = scalar_select %p189, %s15, 1
      %s191 = smul.addr %s190, 6
      %s192 = smul.addr %s191, 8
      %s193 = scalar_lea.vmem %s3, %s192
      %p194 = pneg %p104
      %p195 = pneg %p101
      %p196 = pneg %p130
      %p197 = pneg %p127
      %p198 = scmp.lt.s32.totalorder %s15, 1
      %s199 = scalar_select %p198, %s15, 1
      %s200 = smul.addr %s199, 8
      %s201 = scalar_lea.vmem %s4, %s200
      %p202 = scmp.lt.s32.totalorder %s15, 1
      %s203 = scalar_select %p202, %s15, 1
      %s204 = smul.addr %s203, 12
      %s205 = smul.addr %s204, 8
      %s206 = scalar_lea.vmem %s2, %s205
      %p207 = scmp.lt.s32.totalorder %s15, 1
      %s208 = scalar_select %p207, %s15, 1
      %s209 = smul.addr %s208, 6
      %s210 = smul.addr %s209, 8
      %s211 = scalar_lea.vmem %s3, %s210
      %p212 = scmp.lt.s32.totalorder %s15, 1
      %s213 = scalar_select %p212, %s15, 1
      %s214 = smul.addr %s213, 8
      %s215 = scalar_lea.vmem %s4, %s214
      %v216 = vld [vmem:[%s0] sm:$0x7f]
      %v217 = vld [vmem:[%s206] sm:$0xff]
      %v218 = vld [vmem:[%s206 + $0x8] sm:$0xff]
      %vm219 = vcmask 130048
      %v221 = vsel %vm219, %v216, 0
      %223 = vmatprep.subr.mxu0 0.0
      %224 = vmatpush1.msra.mxu0 0.0
      %225 = vmatprep.subr.mxu0 0.0
      %226 = vmatpush1.msra.mxu0 0.0
      %227 = vmatprep.subr.mxu0 0.0
      %228 = vmatpush1.msra.mxu0 0.0
      %229 = vmatprep.subr.mxu0 0.0
      %230 = vmatpush1.msra.mxu0 0.0
      %231 = vmatprep.subr.mxu0 0.0
      %232 = vmatpush1.msra.mxu0 0.0
      %233 = vmatprep.subr.mxu0 0.0
      %234 = vmatpush1.msra.mxu0 0.0
      %235 = vmatprep.subr.mxu0 0.0
      %236 = vmatpush1.msra.mxu0 0.0
      %237 = vmatprep.subr.mxu0 0.0
      %238 = vmatpush1.msra.mxu0 0.0
      %239 = vmatprep.subr.mxu0 0.0
      %240 = vmatpush1.msra.mxu0 0.0
      %241 = vmatprep.subr.mxu0 0.0
      %242 = vmatpush1.msra.mxu0 0.0
      %243 = vmatprep.subr.mxu0 0.0
      %244 = vmatpush1.msra.mxu0 0.0
      %245 = vmatprep.subr.mxu0 0.0
      %246 = vmatpush1.msra.mxu0 0.0
      %247 = vmatprep.subr.mxu0 0.0
      %248 = vmatpush1.msra.mxu0 0.0
      %249 = vmatprep.subr.mxu0 0.0
      %250 = vmatpush1.msra.mxu0 0.0
      %251 = vmatprep.subr.mxu0 0.0
      %252 = vmatpush1.msra.mxu0 %v218
      %253 = vmatprep.subr.mxu0 0.0
      %254 = vmatpush1.msra.mxu0 %v217
      %255 = vmatprep.subr.mxu0 0.0
      %256 = vmatpush2.msra.mxu0 0.0
      %257 = vmatprep.subr.mxu0 0.0
      %258 = vmatpush2.msra.mxu0 0.0
      %259 = vmatprep.subr.mxu0 0.0
      %260 = vmatpush2.msra.mxu0 0.0
      %261 = vmatprep.subr.mxu0 0.0
      %262 = vmatpush2.msra.mxu0 0.0
      %263 = vmatprep.subr.mxu0 0.0
      %264 = vmatpush2.msra.mxu0 0.0
      %265 = vmatprep.subr.mxu0 0.0
      %266 = vmatpush2.msra.mxu0 0.0
      %267 = vmatprep.subr.mxu0 0.0
      %268 = vmatpush2.msra.mxu0 0.0
      %269 = vmatprep.subr.mxu0 0.0
      %270 = vmatpush2.msra.mxu0 0.0
      %271 = vmatprep.subr.mxu0 0.0
      %272 = vmatpush2.msra.mxu0 0.0
      %273 = vmatprep.subr.mxu0 0.0
      %274 = vmatpush2.msra.mxu0 0.0
      %275 = vmatprep.subr.mxu0 0.0
      %276 = vmatpush2.msra.mxu0 0.0
      %277 = vmatprep.subr.mxu0 0.0
      %278 = vmatpush2.msra.mxu0 0.0
      %279 = vmatprep.subr.mxu0 0.0
      %280 = vmatpush2.msra.mxu0 0.0
      %281 = vmatprep.subr.mxu0 0.0
      %282 = vmatpush2.msra.mxu0 0.0
      %283 = vmatprep.subr.mxu0 0.0
      %284 = vmatpush2.msra.mxu0 0.0
      %285 = vmatprep.subr.mxu0 0.0
      %286 = vmatpush2.msra.mxu0 0.0
      %287 = vmatprep.mubr.f32.mxu0 0.0
      %288 = vmatmul.mubr.f32.gmra.mxu0 %v221
      %v289 = vpop.f32.mrf.mxu0
      %v290 = vadd.f32 0.0, %v289
      %v291 = vpop.f32.mrf.mxu0
      %292 = vdwg.mxu0
      %v293 = vld [vmem:[%s1] sm:$0xff]
      %v294 = vld [vmem:[%s1 + $0x8] sm:$0xff]
      %v296 = vsel %vm219, %v290, 0
      %298 = vmatprep.subr.mxu0 0.0
      %299 = vmatpush1.msra.mxu0 0.0
      %300 = vmatprep.subr.mxu0 0.0
      %301 = vmatpush1.msra.mxu0 0.0
      %302 = vmatprep.subr.mxu0 0.0
      %303 = vmatpush1.msra.mxu0 0.0
      %304 = vmatprep.subr.mxu0 0.0
      %305 = vmatpush1.msra.mxu0 0.0
      %306 = vmatprep.subr.mxu0 0.0
      %307 = vmatpush1.msra.mxu0 0.0
      %308 = vmatprep.subr.mxu0 0.0
      %309 = vmatpush1.msra.mxu0 0.0
      %310 = vmatprep.subr.mxu0 0.0
      %311 = vmatpush1.msra.mxu0 0.0
      %312 = vmatprep.subr.mxu0 0.0
      %313 = vmatpush1.msra.mxu0 0.0
      %314 = vmatprep.subr.mxu0 0.0
      %315 = vmatpush1.msra.mxu0 0.0
      %316 = vmatprep.subr.mxu0 0.0
      %317 = vmatpush1.msra.mxu0 0.0
      %318 = vmatprep.subr.mxu0 0.0
      %319 = vmatpush1.msra.mxu0 0.0
      %320 = vmatprep.subr.mxu0 0.0
      %321 = vmatpush1.msra.mxu0 0.0
      %322 = vmatprep.subr.mxu0 0.0
      %323 = vmatpush1.msra.mxu0 0.0
      %324 = vmatprep.subr.mxu0 0.0
      %325 = vmatpush1.msra.mxu0 0.0
      %326 = vmatprep.subr.mxu0 0.0
      %327 = vmatpush1.msra.mxu0 %v294
      %328 = vmatprep.subr.mxu0 0.0
      %329 = vmatpush1.msra.mxu0 %v293
      %330 = vmatprep.subr.mxu0 0.0
      %331 = vmatpush2.msra.mxu0 0.0
      %332 = vmatprep.subr.mxu0 0.0
      %333 = vmatpush2.msra.mxu0 0.0
      %334 = vmatprep.subr.mxu0 0.0
      %335 = vmatpush2.msra.mxu0 0.0
      %336 = vmatprep.subr.mxu0 0.0
      %337 = vmatpush2.msra.mxu0 0.0
      %338 = vmatprep.subr.mxu0 0.0
      %339 = vmatpush2.msra.mxu0 0.0
      %340 = vmatprep.subr.mxu0 0.0
      %341 = vmatpush2.msra.mxu0 0.0
      %342 = vmatprep.subr.mxu0 0.0
      %343 = vmatpush2.msra.mxu0 0.0
      %344 = vmatprep.subr.mxu0 0.0
      %345 = vmatpush2.msra.mxu0 0.0
      %346 = vmatprep.subr.mxu0 0.0
      %347 = vmatpush2.msra.mxu0 0.0
      %348 = vmatprep.subr.mxu0 0.0
      %349 = vmatpush2.msra.mxu0 0.0
      %350 = vmatprep.subr.mxu0 0.0
      %351 = vmatpush2.msra.mxu0 0.0
      %352 = vmatprep.subr.mxu0 0.0
      %353 = vmatpush2.msra.mxu0 0.0
      %354 = vmatprep.subr.mxu0 0.0
      %355 = vmatpush2.msra.mxu0 0.0
      %356 = vmatprep.subr.mxu0 0.0
      %357 = vmatpush2.msra.mxu0 0.0
      %358 = vmatprep.subr.mxu0 0.0
      %359 = vmatpush2.msra.mxu0 0.0
      %360 = vmatprep.subr.mxu0 0.0
      %361 = vmatpush2.msra.mxu0 0.0
      %362 = vmatprep.mubr.f32.mxu0 0.0
      %363 = vmatmul.mubr.f32.gmra.mxu0 %v296
      %v364 = vpop.f32.mrf.mxu0
      %v365 = vadd.f32 0.0, %v364
      %v366 = vpop.f32.mrf.mxu0
      %367 = vdwg.mxu0
      %v368 = vld [vmem:[%s211] sm:$0x7f]
      %v369 = vmul.f32 %v365, %v368
      %v370 = vadd.f32 %v369, 0.0
      %v371 = vmul.f32 %v365, %v365
      %v372 = vadd.f32 %v371, 0.0
      %v373 = vmul.f32 %v368, %v368
      %v374 = vadd.f32 %v373, 0.0
      %s375 = scalar_lea.vmem %s0, 8
      %v376 = vld [vmem:[%s375] sm:$0x7f]
      %s377 = scalar_lea.vmem %s206, 16
      %v378 = vld [vmem:[%s377] sm:$0xff]
      %v379 = vld [vmem:[%s377 + $0x8] sm:$0xff]
      %v381 = vsel %vm219, %v376, 0
      %383 = vmatprep.subr.mxu0 0.0
      %384 = vmatpush1.msra.mxu0 0.0
      %385 = vmatprep.subr.mxu0 0.0
      %386 = vmatpush1.msra.mxu0 0.0
      %387 = vmatprep.subr.mxu0 0.0
      %388 = vmatpush1.msra.mxu0 0.0
      %389 = vmatprep.subr.mxu0 0.0
      %390 = vmatpush1.msra.mxu0 0.0
      %391 = vmatprep.subr.mxu0 0.0
      %392 = vmatpush1.msra.mxu0 0.0
      %393 = vmatprep.subr.mxu0 0.0
      %394 = vmatpush1.msra.mxu0 0.0
      %395 = vmatprep.subr.mxu0 0.0
      %396 = vmatpush1.msra.mxu0 0.0
      %397 = vmatprep.subr.mxu0 0.0
      %398 = vmatpush1.msra.mxu0 0.0
      %399 = vmatprep.subr.mxu0 0.0
      %400 = vmatpush1.msra.mxu0 0.0
      %401 = vmatprep.subr.mxu0 0.0
      %402 = vmatpush1.msra.mxu0 0.0
      %403 = vmatprep.subr.mxu0 0.0
      %404 = vmatpush1.msra.mxu0 0.0
      %405 = vmatprep.subr.mxu0 0.0
      %406 = vmatpush1.msra.mxu0 0.0
      %407 = vmatprep.subr.mxu0 0.0
      %408 = vmatpush1.msra.mxu0 0.0
      %409 = vmatprep.subr.mxu0 0.0
      %410 = vmatpush1.msra.mxu0 0.0
      %411 = vmatprep.subr.mxu0 0.0
      %412 = vmatpush1.msra.mxu0 %v379
      %413 = vmatprep.subr.mxu0 0.0
      %414 = vmatpush1.msra.mxu0 %v378
      %415 = vmatprep.subr.mxu0 0.0
      %416 = vmatpush2.msra.mxu0 0.0
      %417 = vmatprep.subr.mxu0 0.0
      %418 = vmatpush2.msra.mxu0 0.0
      %419 = vmatprep.subr.mxu0 0.0
      %420 = vmatpush2.msra.mxu0 0.0
      %421 = vmatprep.subr.mxu0 0.0
      %422 = vmatpush2.msra.mxu0 0.0
      %423 = vmatprep.subr.mxu0 0.0
      %424 = vmatpush2.msra.mxu0 0.0
      %425 = vmatprep.subr.mxu0 0.0
      %426 = vmatpush2.msra.mxu0 0.0
      %427 = vmatprep.subr.mxu0 0.0
      %428 = vmatpush2.msra.mxu0 0.0
      %429 = vmatprep.subr.mxu0 0.0
      %430 = vmatpush2.msra.mxu0 0.0
      %431 = vmatprep.subr.mxu0 0.0
      %432 = vmatpush2.msra.mxu0 0.0
      %433 = vmatprep.subr.mxu0 0.0
      %434 = vmatpush2.msra.mxu0 0.0
      %435 = vmatprep.subr.mxu0 0.0
      %436 = vmatpush2.msra.mxu0 0.0
      %437 = vmatprep.subr.mxu0 0.0
      %438 = vmatpush2.msra.mxu0 0.0
      %439 = vmatprep.subr.mxu0 0.0
      %440 = vmatpush2.msra.mxu0 0.0
      %441 = vmatprep.subr.mxu0 0.0
      %442 = vmatpush2.msra.mxu0 0.0
      %443 = vmatprep.subr.mxu0 0.0
      %444 = vmatpush2.msra.mxu0 0.0
      %445 = vmatprep.subr.mxu0 0.0
      %446 = vmatpush2.msra.mxu0 0.0
      %447 = vmatprep.mubr.f32.mxu0 0.0
      %448 = vmatmul.mubr.f32.gmra.mxu0 %v381
      %v449 = vpop.f32.mrf.mxu0
      %v450 = vadd.f32 0.0, %v449
      %v451 = vpop.f32.mrf.mxu0
      %452 = vdwg.mxu0
      %s453 = scalar_lea.vmem %s1, 16
      %v454 = vld [vmem:[%s453] sm:$0xff]
      %v455 = vld [vmem:[%s453 + $0x8] sm:$0xff]
      %v457 = vsel %vm219, %v450, 0
      %459 = vmatprep.subr.mxu0 0.0
      %460 = vmatpush1.msra.mxu0 0.0
      %461 = vmatprep.subr.mxu0 0.0
      %462 = vmatpush1.msra.mxu0 0.0
      %463 = vmatprep.subr.mxu0 0.0
      %464 = vmatpush1.msra.mxu0 0.0
      %465 = vmatprep.subr.mxu0 0.0
      %466 = vmatpush1.msra.mxu0 0.0
      %467 = vmatprep.subr.mxu0 0.0
      %468 = vmatpush1.msra.mxu0 0.0
      %469 = vmatprep.subr.mxu0 0.0
      %470 = vmatpush1.msra.mxu0 0.0
      %471 = vmatprep.subr.mxu0 0.0
      %472 = vmatpush1.msra.mxu0 0.0
      %473 = vmatprep.subr.mxu0 0.0
      %474 = vmatpush1.msra.mxu0 0.0
      %475 = vmatprep.subr.mxu0 0.0
      %476 = vmatpush1.msra.mxu0 0.0
      %477 = vmatprep.subr.mxu0 0.0
      %478 = vmatpush1.msra.mxu0 0.0
      %479 = vmatprep.subr.mxu0 0.0
      %480 = vmatpush1.msra.mxu0 0.0
      %481 = vmatprep.subr.mxu0 0.0
      %482 = vmatpush1.msra.mxu0 0.0
      %483 = vmatprep.subr.mxu0 0.0
      %484 = vmatpush1.msra.mxu0 0.0
      %485 = vmatprep.subr.mxu0 0.0
      %486 = vmatpush1.msra.mxu0 0.0
      %487 = vmatprep.subr.mxu0 0.0
      %488 = vmatpush1.msra.mxu0 %v455
      %489 = vmatprep.subr.mxu0 0.0
      %490 = vmatpush1.msra.mxu0 %v454
      %491 = vmatprep.subr.mxu0 0.0
      %492 = vmatpush2.msra.mxu0 0.0
      %493 = vmatprep.subr.mxu0 0.0
      %494 = vmatpush2.msra.mxu0 0.0
      %495 = vmatprep.subr.mxu0 0.0
      %496 = vmatpush2.msra.mxu0 0.0
      %497 = vmatprep.subr.mxu0 0.0
      %498 = vmatpush2.msra.mxu0 0.0
      %499 = vmatprep.subr.mxu0 0.0
      %500 = vmatpush2.msra.mxu0 0.0
      %501 = vmatprep.subr.mxu0 0.0
      %502 = vmatpush2.msra.mxu0 0.0
      %503 = vmatprep.subr.mxu0 0.0
      %504 = vmatpush2.msra.mxu0 0.0
      %505 = vmatprep.subr.mxu0 0.0
      %506 = vmatpush2.msra.mxu0 0.0
      %507 = vmatprep.subr.mxu0 0.0
      %508 = vmatpush2.msra.mxu0 0.0
      %509 = vmatprep.subr.mxu0 0.0
      %510 = vmatpush2.msra.mxu0 0.0
      %511 = vmatprep.subr.mxu0 0.0
      %512 = vmatpush2.msra.mxu0 0.0
      %513 = vmatprep.subr.mxu0 0.0
      %514 = vmatpush2.msra.mxu0 0.0
      %515 = vmatprep.subr.mxu0 0.0
      %516 = vmatpush2.msra.mxu0 0.0
      %517 = vmatprep.subr.mxu0 0.0
      %518 = vmatpush2.msra.mxu0 0.0
      %519 = vmatprep.subr.mxu0 0.0
      %520 = vmatpush2.msra.mxu0 0.0
      %521 = vmatprep.subr.mxu0 0.0
      %522 = vmatpush2.msra.mxu0 0.0
      %523 = vmatprep.mubr.f32.mxu0 0.0
      %524 = vmatmul.mubr.f32.gmra.mxu0 %v457
      %v525 = vpop.f32.mrf.mxu0
      %v526 = vadd.f32 0.0, %v525
      %v527 = vpop.f32.mrf.mxu0
      %528 = vdwg.mxu0
      %s529 = scalar_lea.vmem %s211, 8
      %v530 = vld [vmem:[%s529] sm:$0x7f]
      %v531 = vmul.f32 %v526, %v530
      %v532 = vadd.f32 %v370, %v531
      %v533 = vmul.f32 %v526, %v526
      %v534 = vadd.f32 %v372, %v533
      %v535 = vmul.f32 %v530, %v530
      %v536 = vadd.f32 %v374, %v535
      %s537 = scalar_lea.vmem %s0, 16
      %v538 = vld [vmem:[%s537] sm:$0x7f]
      %s539 = scalar_lea.vmem %s206, 32
      %v540 = vld [vmem:[%s539] sm:$0xff]
      %v541 = vld [vmem:[%s539 + $0x8] sm:$0xff]
      %v543 = vsel %vm219, %v538, 0
      %545 = vmatprep.subr.mxu0 0.0
      %546 = vmatpush1.msra.mxu0 0.0
      %547 = vmatprep.subr.mxu0 0.0
      %548 = vmatpush1.msra.mxu0 0.0
      %549 = vmatprep.subr.mxu0 0.0
      %550 = vmatpush1.msra.mxu0 0.0
      %551 = vmatprep.subr.mxu0 0.0
      %552 = vmatpush1.msra.mxu0 0.0
      %553 = vmatprep.subr.mxu0 0.0
      %554 = vmatpush1.msra.mxu0 0.0
      %555 = vmatprep.subr.mxu0 0.0
      %556 = vmatpush1.msra.mxu0 0.0
      %557 = vmatprep.subr.mxu0 0.0
      %558 = vmatpush1.msra.mxu0 0.0
      %559 = vmatprep.subr.mxu0 0.0
      %560 = vmatpush1.msra.mxu0 0.0
      %561 = vmatprep.subr.mxu0 0.0
      %562 = vmatpush1.msra.mxu0 0.0
      %563 = vmatprep.subr.mxu0 0.0
      %564 = vmatpush1.msra.mxu0 0.0
      %565 = vmatprep.subr.mxu0 0.0
      %566 = vmatpush1.msra.mxu0 0.0
      %567 = vmatprep.subr.mxu0 0.0
      %568 = vmatpush1.msra.mxu0 0.0
      %569 = vmatprep.subr.mxu0 0.0
      %570 = vmatpush1.msra.mxu0 0.0
      %571 = vmatprep.subr.mxu0 0.0
      %572 = vmatpush1.msra.mxu0 0.0
      %573 = vmatprep.subr.mxu0 0.0
      %574 = vmatpush1.msra.mxu0 %v541
      %575 = vmatprep.subr.mxu0 0.0
      %576 = vmatpush1.msra.mxu0 %v540
      %577 = vmatprep.subr.mxu0 0.0
      %578 = vmatpush2.msra.mxu0 0.0
      %579 = vmatprep.subr.mxu0 0.0
      %580 = vmatpush2.msra.mxu0 0.0
      %581 = vmatprep.subr.mxu0 0.0
      %582 = vmatpush2.msra.mxu0 0.0
      %583 = vmatprep.subr.mxu0 0.0
      %584 = vmatpush2.msra.mxu0 0.0
      %585 = vmatprep.subr.mxu0 0.0
      %586 = vmatpush2.msra.mxu0 0.0
      %587 = vmatprep.subr.mxu0 0.0
      %588 = vmatpush2.msra.mxu0 0.0
      %589 = vmatprep.subr.mxu0 0.0
      %590 = vmatpush2.msra.mxu0 0.0
      %591 = vmatprep.subr.mxu0 0.0
      %592 = vmatpush2.msra.mxu0 0.0
      %593 = vmatprep.subr.mxu0 0.0
      %594 = vmatpush2.msra.mxu0 0.0
      %595 = vmatprep.subr.mxu0 0.0
      %596 = vmatpush2.msra.mxu0 0.0
      %597 = vmatprep.subr.mxu0 0.0
      %598 = vmatpush2.msra.mxu0 0.0
      %599 = vmatprep.subr.mxu0 0.0
      %600 = vmatpush2.msra.mxu0 0.0
      %601 = vmatprep.subr.mxu0 0.0
      %602 = vmatpush2.msra.mxu0 0.0
      %603 = vmatprep.subr.mxu0 0.0
      %604 = vmatpush2.msra.mxu0 0.0
      %605 = vmatprep.subr.mxu0 0.0
      %606 = vmatpush2.msra.mxu0 0.0
      %607 = vmatprep.subr.mxu0 0.0
      %608 = vmatpush2.msra.mxu0 0.0
      %609 = vmatprep.mubr.f32.mxu0 0.0
      %610 = vmatmul.mubr.f32.gmra.mxu0 %v543
      %v611 = vpop.f32.mrf.mxu0
      %v612 = vadd.f32 0.0, %v611
      %v613 = vpop.f32.mrf.mxu0
      %614 = vdwg.mxu0
      %s615 = scalar_lea.vmem %s1, 32
      %v616 = vld [vmem:[%s615] sm:$0xff]
      %v617 = vld [vmem:[%s615 + $0x8] sm:$0xff]
      %v619 = vsel %vm219, %v612, 0
      %621 = vmatprep.subr.mxu0 0.0
      %622 = vmatpush1.msra.mxu0 0.0
      %623 = vmatprep.subr.mxu0 0.0
      %624 = vmatpush1.msra.mxu0 0.0
      %625 = vmatprep.subr.mxu0 0.0
      %626 = vmatpush1.msra.mxu0 0.0
      %627 = vmatprep.subr.mxu0 0.0
      %628 = vmatpush1.msra.mxu0 0.0
      %629 = vmatprep.subr.mxu0 0.0
      %630 = vmatpush1.msra.mxu0 0.0
      %631 = vmatprep.subr.mxu0 0.0
      %632 = vmatpush1.msra.mxu0 0.0
      %633 = vmatprep.subr.mxu0 0.0
      %634 = vmatpush1.msra.mxu0 0.0
      %635 = vmatprep.subr.mxu0 0.0
      %636 = vmatpush1.msra.mxu0 0.0
      %637 = vmatprep.subr.mxu0 0.0
      %638 = vmatpush1.msra.mxu0 0.0
      %639 = vmatprep.subr.mxu0 0.0
      %640 = vmatpush1.msra.mxu0 0.0
      %641 = vmatprep.subr.mxu0 0.0
      %642 = vmatpush1.msra.mxu0 0.0
      %643 = vmatprep.subr.mxu0 0.0
      %644 = vmatpush1.msra.mxu0 0.0
      %645 = vmatprep.subr.mxu0 0.0
      %646 = vmatpush1.msra.mxu0 0.0
      %647 = vmatprep.subr.mxu0 0.0
      %648 = vmatpush1.msra.mxu0 0.0
      %649 = vmatprep.subr.mxu0 0.0
      %650 = vmatpush1.msra.mxu0 %v617
      %651 = vmatprep.subr.mxu0 0.0
      %652 = vmatpush1.msra.mxu0 %v616
      %653 = vmatprep.subr.mxu0 0.0
      %654 = vmatpush2.msra.mxu0 0.0
      %655 = vmatprep.subr.mxu0 0.0
      %656 = vmatpush2.msra.mxu0 0.0
      %657 = vmatprep.subr.mxu0 0.0
      %658 = vmatpush2.msra.mxu0 0.0
      %659 = vmatprep.subr.mxu0 0.0
      %660 = vmatpush2.msra.mxu0 0.0
      %661 = vmatprep.subr.mxu0 0.0
      %662 = vmatpush2.msra.mxu0 0.0
      %663 = vmatprep.subr.mxu0 0.0
      %664 = vmatpush2.msra.mxu0 0.0
      %665 = vmatprep.subr.mxu0 0.0
      %666 = vmatpush2.msra.mxu0 0.0
      %667 = vmatprep.subr.mxu0 0.0
      %668 = vmatpush2.msra.mxu0 0.0
      %669 = vmatprep.subr.mxu0 0.0
      %670 = vmatpush2.msra.mxu0 0.0
      %671 = vmatprep.subr.mxu0 0.0
      %672 = vmatpush2.msra.mxu0 0.0
      %673 = vmatprep.subr.mxu0 0.0
      %674 = vmatpush2.msra.mxu0 0.0
      %675 = vmatprep.subr.mxu0 0.0
      %676 = vmatpush2.msra.mxu0 0.0
      %677 = vmatprep.subr.mxu0 0.0
      %678 = vmatpush2.msra.mxu0 0.0
      %679 = vmatprep.subr.mxu0 0.0
      %680 = vmatpush2.msra.mxu0 0.0
      %681 = vmatprep.subr.mxu0 0.0
      %682 = vmatpush2.msra.mxu0 0.0
      %683 = vmatprep.subr.mxu0 0.0
      %684 = vmatpush2.msra.mxu0 0.0
      %685 = vmatprep.mubr.f32.mxu0 0.0
      %686 = vmatmul.mubr.f32.gmra.mxu0 %v619
      %v687 = vpop.f32.mrf.mxu0
      %v688 = vadd.f32 0.0, %v687
      %v689 = vpop.f32.mrf.mxu0
      %690 = vdwg.mxu0
      %s691 = scalar_lea.vmem %s211, 16
      %v692 = vld [vmem:[%s691] sm:$0x7f]
      %v693 = vmul.f32 %v688, %v692
      %v694 = vadd.f32 %v532, %v693
      %v695 = vmul.f32 %v688, %v688
      %v696 = vadd.f32 %v534, %v695
      %v697 = vmul.f32 %v692, %v692
      %v698 = vadd.f32 %v536, %v697
      %s699 = scalar_lea.vmem %s0, 24
      %v700 = vld [vmem:[%s699] sm:$0x7f]
      %s701 = scalar_lea.vmem %s206, 48
      %v702 = vld [vmem:[%s701] sm:$0xff]
      %v703 = vld [vmem:[%s701 + $0x8] sm:$0xff]
      %v705 = vsel %vm219, %v700, 0
      %707 = vmatprep.subr.mxu0 0.0
      %708 = vmatpush1.msra.mxu0 0.0
      %709 = vmatprep.subr.mxu0 0.0
      %710 = vmatpush1.msra.mxu0 0.0
      %711 = vmatprep.subr.mxu0 0.0
      %712 = vmatpush1.msra.mxu0 0.0
      %713 = vmatprep.subr.mxu0 0.0
      %714 = vmatpush1.msra.mxu0 0.0
      %715 = vmatprep.subr.mxu0 0.0
      %716 = vmatpush1.msra.mxu0 0.0
      %717 = vmatprep.subr.mxu0 0.0
      %718 = vmatpush1.msra.mxu0 0.0
      %719 = vmatprep.subr.mxu0 0.0
      %720 = vmatpush1.msra.mxu0 0.0
      %721 = vmatprep.subr.mxu0 0.0
      %722 = vmatpush1.msra.mxu0 0.0
      %723 = vmatprep.subr.mxu0 0.0
      %724 = vmatpush1.msra.mxu0 0.0
      %725 = vmatprep.subr.mxu0 0.0
      %726 = vmatpush1.msra.mxu0 0.0
      %727 = vmatprep.subr.mxu0 0.0
      %728 = vmatpush1.msra.mxu0 0.0
      %729 = vmatprep.subr.mxu0 0.0
      %730 = vmatpush1.msra.mxu0 0.0
      %731 = vmatprep.subr.mxu0 0.0
      %732 = vmatpush1.msra.mxu0 0.0
      %733 = vmatprep.subr.mxu0 0.0
      %734 = vmatpush1.msra.mxu0 0.0
      %735 = vmatprep.subr.mxu0 0.0
      %736 = vmatpush1.msra.mxu0 %v703
      %737 = vmatprep.subr.mxu0 0.0
      %738 = vmatpush1.msra.mxu0 %v702
      %739 = vmatprep.subr.mxu0 0.0
      %740 = vmatpush2.msra.mxu0 0.0
      %741 = vmatprep.subr.mxu0 0.0
      %742 = vmatpush2.msra.mxu0 0.0
      %743 = vmatprep.subr.mxu0 0.0
      %744 = vmatpush2.msra.mxu0 0.0
      %745 = vmatprep.subr.mxu0 0.0
      %746 = vmatpush2.msra.mxu0 0.0
      %747 = vmatprep.subr.mxu0 0.0
      %748 = vmatpush2.msra.mxu0 0.0
      %749 = vmatprep.subr.mxu0 0.0
      %750 = vmatpush2.msra.mxu0 0.0
      %751 = vmatprep.subr.mxu0 0.0
      %752 = vmatpush2.msra.mxu0 0.0
      %753 = vmatprep.subr.mxu0 0.0
      %754 = vmatpush2.msra.mxu0 0.0
      %755 = vmatprep.subr.mxu0 0.0
      %756 = vmatpush2.msra.mxu0 0.0
      %757 = vmatprep.subr.mxu0 0.0
      %758 = vmatpush2.msra.mxu0 0.0
      %759 = vmatprep.subr.mxu0 0.0
      %760 = vmatpush2.msra.mxu0 0.0
      %761 = vmatprep.subr.mxu0 0.0
      %762 = vmatpush2.msra.mxu0 0.0
      %763 = vmatprep.subr.mxu0 0.0
      %764 = vmatpush2.msra.mxu0 0.0
      %765 = vmatprep.subr.mxu0 0.0
      %766 = vmatpush2.msra.mxu0 0.0
      %767 = vmatprep.subr.mxu0 0.0
      %768 = vmatpush2.msra.mxu0 0.0
      %769 = vmatprep.subr.mxu0 0.0
      %770 = vmatpush2.msra.mxu0 0.0
      %771 = vmatprep.mubr.f32.mxu0 0.0
      %772 = vmatmul.mubr.f32.gmra.mxu0 %v705
      %v773 = vpop.f32.mrf.mxu0
      %v774 = vadd.f32 0.0, %v773
      %v775 = vpop.f32.mrf.mxu0
      %776 = vdwg.mxu0
      %s777 = scalar_lea.vmem %s1, 48
      %v778 = vld [vmem:[%s777] sm:$0xff]
      %v779 = vld [vmem:[%s777 + $0x8] sm:$0xff]
      %v781 = vsel %vm219, %v774, 0
      %783 = vmatprep.subr.mxu0 0.0
      %784 = vmatpush1.msra.mxu0 0.0
      %785 = vmatprep.subr.mxu0 0.0
      %786 = vmatpush1.msra.mxu0 0.0
      %787 = vmatprep.subr.mxu0 0.0
      %788 = vmatpush1.msra.mxu0 0.0
      %789 = vmatprep.subr.mxu0 0.0
      %790 = vmatpush1.msra.mxu0 0.0
      %791 = vmatprep.subr.mxu0 0.0
      %792 = vmatpush1.msra.mxu0 0.0
      %793 = vmatprep.subr.mxu0 0.0
      %794 = vmatpush1.msra.mxu0 0.0
      %795 = vmatprep.subr.mxu0 0.0
      %796 = vmatpush1.msra.mxu0 0.0
      %797 = vmatprep.subr.mxu0 0.0
      %798 = vmatpush1.msra.mxu0 0.0
      %799 = vmatprep.subr.mxu0 0.0
      %800 = vmatpush1.msra.mxu0 0.0
      %801 = vmatprep.subr.mxu0 0.0
      %802 = vmatpush1.msra.mxu0 0.0
      %803 = vmatprep.subr.mxu0 0.0
      %804 = vmatpush1.msra.mxu0 0.0
      %805 = vmatprep.subr.mxu0 0.0
      %806 = vmatpush1.msra.mxu0 0.0
      %807 = vmatprep.subr.mxu0 0.0
      %808 = vmatpush1.msra.mxu0 0.0
      %809 = vmatprep.subr.mxu0 0.0
      %810 = vmatpush1.msra.mxu0 0.0
      %811 = vmatprep.subr.mxu0 0.0
      %812 = vmatpush1.msra.mxu0 %v779
      %813 = vmatprep.subr.mxu0 0.0
      %814 = vmatpush1.msra.mxu0 %v778
      %815 = vmatprep.subr.mxu0 0.0
      %816 = vmatpush2.msra.mxu0 0.0
      %817 = vmatprep.subr.mxu0 0.0
      %818 = vmatpush2.msra.mxu0 0.0
      %819 = vmatprep.subr.mxu0 0.0
      %820 = vmatpush2.msra.mxu0 0.0
      %821 = vmatprep.subr.mxu0 0.0
      %822 = vmatpush2.msra.mxu0 0.0
      %823 = vmatprep.subr.mxu0 0.0
      %824 = vmatpush2.msra.mxu0 0.0
      %825 = vmatprep.subr.mxu0 0.0
      %826 = vmatpush2.msra.mxu0 0.0
      %827 = vmatprep.subr.mxu0 0.0
      %828 = vmatpush2.msra.mxu0 0.0
      %829 = vmatprep.subr.mxu0 0.0
      %830 = vmatpush2.msra.mxu0 0.0
      %831 = vmatprep.subr.mxu0 0.0
      %832 = vmatpush2.msra.mxu0 0.0
      %833 = vmatprep.subr.mxu0 0.0
      %834 = vmatpush2.msra.mxu0 0.0
      %835 = vmatprep.subr.mxu0 0.0
      %836 = vmatpush2.msra.mxu0 0.0
      %837 = vmatprep.subr.mxu0 0.0
      %838 = vmatpush2.msra.mxu0 0.0
      %839 = vmatprep.subr.mxu0 0.0
      %840 = vmatpush2.msra.mxu0 0.0
      %841 = vmatprep.subr.mxu0 0.0
      %842 = vmatpush2.msra.mxu0 0.0
      %843 = vmatprep.subr.mxu0 0.0
      %844 = vmatpush2.msra.mxu0 0.0
      %845 = vmatprep.subr.mxu0 0.0
      %846 = vmatpush2.msra.mxu0 0.0
      %847 = vmatprep.mubr.f32.mxu0 0.0
      %848 = vmatmul.mubr.f32.gmra.mxu0 %v781
      %v849 = vpop.f32.mrf.mxu0
      %v850 = vadd.f32 0.0, %v849
      %v851 = vpop.f32.mrf.mxu0
      %852 = vdwg.mxu0
      %s853 = scalar_lea.vmem %s211, 24
      %v854 = vld [vmem:[%s853] sm:$0x7f]
      %v855 = vmul.f32 %v850, %v854
      %v856 = vadd.f32 %v694, %v855
      %v857 = vmul.f32 %v850, %v850
      %v858 = vadd.f32 %v696, %v857
      %v859 = vmul.f32 %v854, %v854
      %v860 = vadd.f32 %v698, %v859
      %s861 = scalar_lea.vmem %s0, 32
      %v862 = vld [vmem:[%s861] sm:$0x7f]
      %s863 = scalar_lea.vmem %s206, 64
      %v864 = vld [vmem:[%s863] sm:$0xff]
      %v865 = vld [vmem:[%s863 + $0x8] sm:$0xff]
      %v867 = vsel %vm219, %v862, 0
      %869 = vmatprep.subr.mxu0 0.0
      %870 = vmatpush1.msra.mxu0 0.0
      %871 = vmatprep.subr.mxu0 0.0
      %872 = vmatpush1.msra.mxu0 0.0
      %873 = vmatprep.subr.mxu0 0.0
      %874 = vmatpush1.msra.mxu0 0.0
      %875 = vmatprep.subr.mxu0 0.0
      %876 = vmatpush1.msra.mxu0 0.0
      %877 = vmatprep.subr.mxu0 0.0
      %878 = vmatpush1.msra.mxu0 0.0
      %879 = vmatprep.subr.mxu0 0.0
      %880 = vmatpush1.msra.mxu0 0.0
      %881 = vmatprep.subr.mxu0 0.0
      %882 = vmatpush1.msra.mxu0 0.0
      %883 = vmatprep.subr.mxu0 0.0
      %884 = vmatpush1.msra.mxu0 0.0
      %885 = vmatprep.subr.mxu0 0.0
      %886 = vmatpush1.msra.mxu0 0.0
      %887 = vmatprep.subr.mxu0 0.0
      %888 = vmatpush1.msra.mxu0 0.0
      %889 = vmatprep.subr.mxu0 0.0
      %890 = vmatpush1.msra.mxu0 0.0
      %891 = vmatprep.subr.mxu0 0.0
      %892 = vmatpush1.msra.mxu0 0.0
      %893 = vmatprep.subr.mxu0 0.0
      %894 = vmatpush1.msra.mxu0 0.0
      %895 = vmatprep.subr.mxu0 0.0
      %896 = vmatpush1.msra.mxu0 0.0
      %897 = vmatprep.subr.mxu0 0.0
      %898 = vmatpush1.msra.mxu0 %v865
      %899 = vmatprep.subr.mxu0 0.0
      %900 = vmatpush1.msra.mxu0 %v864
      %901 = vmatprep.subr.mxu0 0.0
      %902 = vmatpush2.msra.mxu0 0.0
      %903 = vmatprep.subr.mxu0 0.0
      %904 = vmatpush2.msra.mxu0 0.0
      %905 = vmatprep.subr.mxu0 0.0
      %906 = vmatpush2.msra.mxu0 0.0
      %907 = vmatprep.subr.mxu0 0.0
      %908 = vmatpush2.msra.mxu0 0.0
      %909 = vmatprep.subr.mxu0 0.0
      %910 = vmatpush2.msra.mxu0 0.0
      %911 = vmatprep.subr.mxu0 0.0
      %912 = vmatpush2.msra.mxu0 0.0
      %913 = vmatprep.subr.mxu0 0.0
      %914 = vmatpush2.msra.mxu0 0.0
      %915 = vmatprep.subr.mxu0 0.0
      %916 = vmatpush2.msra.mxu0 0.0
      %917 = vmatprep.subr.mxu0 0.0
      %918 = vmatpush2.msra.mxu0 0.0
      %919 = vmatprep.subr.mxu0 0.0
      %920 = vmatpush2.msra.mxu0 0.0
      %921 = vmatprep.subr.mxu0 0.0
      %922 = vmatpush2.msra.mxu0 0.0
      %923 = vmatprep.subr.mxu0 0.0
      %924 = vmatpush2.msra.mxu0 0.0
      %925 = vmatprep.subr.mxu0 0.0
      %926 = vmatpush2.msra.mxu0 0.0
      %927 = vmatprep.subr.mxu0 0.0
      %928 = vmatpush2.msra.mxu0 0.0
      %929 = vmatprep.subr.mxu0 0.0
      %930 = vmatpush2.msra.mxu0 0.0
      %931 = vmatprep.subr.mxu0 0.0
      %932 = vmatpush2.msra.mxu0 0.0
      %933 = vmatprep.mubr.f32.mxu0 0.0
      %934 = vmatmul.mubr.f32.gmra.mxu0 %v867
      %v935 = vpop.f32.mrf.mxu0
      %v936 = vadd.f32 0.0, %v935
      %v937 = vpop.f32.mrf.mxu0
      %938 = vdwg.mxu0
      %s939 = scalar_lea.vmem %s1, 64
      %v940 = vld [vmem:[%s939] sm:$0xff]
      %v941 = vld [vmem:[%s939 + $0x8] sm:$0xff]
      %v943 = vsel %vm219, %v936, 0
      %945 = vmatprep.subr.mxu0 0.0
      %946 = vmatpush1.msra.mxu0 0.0
      %947 = vmatprep.subr.mxu0 0.0
      %948 = vmatpush1.msra.mxu0 0.0
      %949 = vmatprep.subr.mxu0 0.0
      %950 = vmatpush1.msra.mxu0 0.0
      %951 = vmatprep.subr.mxu0 0.0
      %952 = vmatpush1.msra.mxu0 0.0
      %953 = vmatprep.subr.mxu0 0.0
      %954 = vmatpush1.msra.mxu0 0.0
      %955 = vmatprep.subr.mxu0 0.0
      %956 = vmatpush1.msra.mxu0 0.0
      %957 = vmatprep.subr.mxu0 0.0
      %958 = vmatpush1.msra.mxu0 0.0
      %959 = vmatprep.subr.mxu0 0.0
      %960 = vmatpush1.msra.mxu0 0.0
      %961 = vmatprep.subr.mxu0 0.0
      %962 = vmatpush1.msra.mxu0 0.0
      %963 = vmatprep.subr.mxu0 0.0
      %964 = vmatpush1.msra.mxu0 0.0
      %965 = vmatprep.subr.mxu0 0.0
      %966 = vmatpush1.msra.mxu0 0.0
      %967 = vmatprep.subr.mxu0 0.0
      %968 = vmatpush1.msra.mxu0 0.0
      %969 = vmatprep.subr.mxu0 0.0
      %970 = vmatpush1.msra.mxu0 0.0
      %971 = vmatprep.subr.mxu0 0.0
      %972 = vmatpush1.msra.mxu0 0.0
      %973 = vmatprep.subr.mxu0 0.0
      %974 = vmatpush1.msra.mxu0 %v941
      %975 = vmatprep.subr.mxu0 0.0
      %976 = vmatpush1.msra.mxu0 %v940
      %977 = vmatprep.subr.mxu0 0.0
      %978 = vmatpush2.msra.mxu0 0.0
      %979 = vmatprep.subr.mxu0 0.0
      %980 = vmatpush2.msra.mxu0 0.0
      %981 = vmatprep.subr.mxu0 0.0
      %982 = vmatpush2.msra.mxu0 0.0
      %983 = vmatprep.subr.mxu0 0.0
      %984 = vmatpush2.msra.mxu0 0.0
      %985 = vmatprep.subr.mxu0 0.0
      %986 = vmatpush2.msra.mxu0 0.0
      %987 = vmatprep.subr.mxu0 0.0
      %988 = vmatpush2.msra.mxu0 0.0
      %989 = vmatprep.subr.mxu0 0.0
      %990 = vmatpush2.msra.mxu0 0.0
      %991 = vmatprep.subr.mxu0 0.0
      %992 = vmatpush2.msra.mxu0 0.0
      %993 = vmatprep.subr.mxu0 0.0
      %994 = vmatpush2.msra.mxu0 0.0
      %995 = vmatprep.subr.mxu0 0.0
      %996 = vmatpush2.msra.mxu0 0.0
      %997 = vmatprep.subr.mxu0 0.0
      %998 = vmatpush2.msra.mxu0 0.0
      %999 = vmatprep.subr.mxu0 0.0
      %1000 = vmatpush2.msra.mxu0 0.0
      %1001 = vmatprep.subr.mxu0 0.0
      %1002 = vmatpush2.msra.mxu0 0.0
      %1003 = vmatprep.subr.mxu0 0.0
      %1004 = vmatpush2.msra.mxu0 0.0
      %1005 = vmatprep.subr.mxu0 0.0
      %1006 = vmatpush2.msra.mxu0 0.0
      %1007 = vmatprep.subr.mxu0 0.0
      %1008 = vmatpush2.msra.mxu0 0.0
      %1009 = vmatprep.mubr.f32.mxu0 0.0
      %1010 = vmatmul.mubr.f32.gmra.mxu0 %v943
      %v1011 = vpop.f32.mrf.mxu0
      %v1012 = vadd.f32 0.0, %v1011
      %v1013 = vpop.f32.mrf.mxu0
      %1014 = vdwg.mxu0
      %s1015 = scalar_lea.vmem %s211, 32
      %v1016 = vld [vmem:[%s1015] sm:$0x7f]
      %v1017 = vmul.f32 %v1012, %v1016
      %v1018 = vadd.f32 %v856, %v1017
      %v1019 = vmul.f32 %v1012, %v1012
      %v1020 = vadd.f32 %v858, %v1019
      %v1021 = vmul.f32 %v1016, %v1016
      %v1022 = vadd.f32 %v860, %v1021
      %s1023 = scalar_lea.vmem %s0, 40
      %v1024 = vld [vmem:[%s1023] sm:$0x7f]
      %s1025 = scalar_lea.vmem %s206, 80
      %v1026 = vld [vmem:[%s1025] sm:$0xff]
      %v1027 = vld [vmem:[%s1025 + $0x8] sm:$0xff]
      %v1029 = vsel %vm219, %v1024, 0
      %1031 = vmatprep.subr.mxu0 0.0
      %1032 = vmatpush1.msra.mxu0 0.0
      %1033 = vmatprep.subr.mxu0 0.0
      %1034 = vmatpush1.msra.mxu0 0.0
      %1035 = vmatprep.subr.mxu0 0.0
      %1036 = vmatpush1.msra.mxu0 0.0
      %1037 = vmatprep.subr.mxu0 0.0
      %1038 = vmatpush1.msra.mxu0 0.0
      %1039 = vmatprep.subr.mxu0 0.0
      %1040 = vmatpush1.msra.mxu0 0.0
      %1041 = vmatprep.subr.mxu0 0.0
      %1042 = vmatpush1.msra.mxu0 0.0
      %1043 = vmatprep.subr.mxu0 0.0
      %1044 = vmatpush1.msra.mxu0 0.0
      %1045 = vmatprep.subr.mxu0 0.0
      %1046 = vmatpush1.msra.mxu0 0.0
      %1047 = vmatprep.subr.mxu0 0.0
      %1048 = vmatpush1.msra.mxu0 0.0
      %1049 = vmatprep.subr.mxu0 0.0
      %1050 = vmatpush1.msra.mxu0 0.0
      %1051 = vmatprep.subr.mxu0 0.0
      %1052 = vmatpush1.msra.mxu0 0.0
      %1053 = vmatprep.subr.mxu0 0.0
      %1054 = vmatpush1.msra.mxu0 0.0
      %1055 = vmatprep.subr.mxu0 0.0
      %1056 = vmatpush1.msra.mxu0 0.0
      %1057 = vmatprep.subr.mxu0 0.0
      %1058 = vmatpush1.msra.mxu0 0.0
      %1059 = vmatprep.subr.mxu0 0.0
      %1060 = vmatpush1.msra.mxu0 %v1027
      %1061 = vmatprep.subr.mxu0 0.0
      %1062 = vmatpush1.msra.mxu0 %v1026
      %1063 = vmatprep.subr.mxu0 0.0
      %1064 = vmatpush2.msra.mxu0 0.0
      %1065 = vmatprep.subr.mxu0 0.0
      %1066 = vmatpush2.msra.mxu0 0.0
      %1067 = vmatprep.subr.mxu0 0.0
      %1068 = vmatpush2.msra.mxu0 0.0
      %1069 = vmatprep.subr.mxu0 0.0
      %1070 = vmatpush2.msra.mxu0 0.0
      %1071 = vmatprep.subr.mxu0 0.0
      %1072 = vmatpush2.msra.mxu0 0.0
      %1073 = vmatprep.subr.mxu0 0.0
      %1074 = vmatpush2.msra.mxu0 0.0
      %1075 = vmatprep.subr.mxu0 0.0
      %1076 = vmatpush2.msra.mxu0 0.0
      %1077 = vmatprep.subr.mxu0 0.0
      %1078 = vmatpush2.msra.mxu0 0.0
      %1079 = vmatprep.subr.mxu0 0.0
      %1080 = vmatpush2.msra.mxu0 0.0
      %1081 = vmatprep.subr.mxu0 0.0
      %1082 = vmatpush2.msra.mxu0 0.0
      %1083 = vmatprep.subr.mxu0 0.0
      %1084 = vmatpush2.msra.mxu0 0.0
      %1085 = vmatprep.subr.mxu0 0.0
      %1086 = vmatpush2.msra.mxu0 0.0
      %1087 = vmatprep.subr.mxu0 0.0
      %1088 = vmatpush2.msra.mxu0 0.0
      %1089 = vmatprep.subr.mxu0 0.0
      %1090 = vmatpush2.msra.mxu0 0.0
      %1091 = vmatprep.subr.mxu0 0.0
      %1092 = vmatpush2.msra.mxu0 0.0
      %1093 = vmatprep.subr.mxu0 0.0
      %1094 = vmatpush2.msra.mxu0 0.0
      %1095 = vmatprep.mubr.f32.mxu0 0.0
      %1096 = vmatmul.mubr.f32.gmra.mxu0 %v1029
      %v1097 = vpop.f32.mrf.mxu0
      %v1098 = vadd.f32 0.0, %v1097
      %v1099 = vpop.f32.mrf.mxu0
      %1100 = vdwg.mxu0
      %s1101 = scalar_lea.vmem %s1, 80
      %v1102 = vld [vmem:[%s1101] sm:$0xff]
      %v1103 = vld [vmem:[%s1101 + $0x8] sm:$0xff]
      %v1105 = vsel %vm219, %v1098, 0
      %1107 = vmatprep.subr.mxu0 0.0
      %1108 = vmatpush1.msra.mxu0 0.0
      %1109 = vmatprep.subr.mxu0 0.0
      %1110 = vmatpush1.msra.mxu0 0.0
      %1111 = vmatprep.subr.mxu0 0.0
      %1112 = vmatpush1.msra.mxu0 0.0
      %1113 = vmatprep.subr.mxu0 0.0
      %1114 = vmatpush1.msra.mxu0 0.0
      %1115 = vmatprep.subr.mxu0 0.0
      %1116 = vmatpush1.msra.mxu0 0.0
      %1117 = vmatprep.subr.mxu0 0.0
      %1118 = vmatpush1.msra.mxu0 0.0
      %1119 = vmatprep.subr.mxu0 0.0
      %1120 = vmatpush1.msra.mxu0 0.0
      %1121 = vmatprep.subr.mxu0 0.0
      %1122 = vmatpush1.msra.mxu0 0.0
      %1123 = vmatprep.subr.mxu0 0.0
      %1124 = vmatpush1.msra.mxu0 0.0
      %1125 = vmatprep.subr.mxu0 0.0
      %1126 = vmatpush1.msra.mxu0 0.0
      %1127 = vmatprep.subr.mxu0 0.0
      %1128 = vmatpush1.msra.mxu0 0.0
      %1129 = vmatprep.subr.mxu0 0.0
      %1130 = vmatpush1.msra.mxu0 0.0
      %1131 = vmatprep.subr.mxu0 0.0
      %1132 = vmatpush1.msra.mxu0 0.0
      %1133 = vmatprep.subr.mxu0 0.0
      %1134 = vmatpush1.msra.mxu0 0.0
      %1135 = vmatprep.subr.mxu0 0.0
      %1136 = vmatpush1.msra.mxu0 %v1103
      %1137 = vmatprep.subr.mxu0 0.0
      %1138 = vmatpush1.msra.mxu0 %v1102
      %1139 = vmatprep.subr.mxu0 0.0
      %1140 = vmatpush2.msra.mxu0 0.0
      %1141 = vmatprep.subr.mxu0 0.0
      %1142 = vmatpush2.msra.mxu0 0.0
      %1143 = vmatprep.subr.mxu0 0.0
      %1144 = vmatpush2.msra.mxu0 0.0
      %1145 = vmatprep.subr.mxu0 0.0
      %1146 = vmatpush2.msra.mxu0 0.0
      %1147 = vmatprep.subr.mxu0 0.0
      %1148 = vmatpush2.msra.mxu0 0.0
      %1149 = vmatprep.subr.mxu0 0.0
      %1150 = vmatpush2.msra.mxu0 0.0
      %1151 = vmatprep.subr.mxu0 0.0
      %1152 = vmatpush2.msra.mxu0 0.0
      %1153 = vmatprep.subr.mxu0 0.0
      %1154 = vmatpush2.msra.mxu0 0.0
      %1155 = vmatprep.subr.mxu0 0.0
      %1156 = vmatpush2.msra.mxu0 0.0
      %1157 = vmatprep.subr.mxu0 0.0
      %1158 = vmatpush2.msra.mxu0 0.0
      %1159 = vmatprep.subr.mxu0 0.0
      %1160 = vmatpush2.msra.mxu0 0.0
      %1161 = vmatprep.subr.mxu0 0.0
      %1162 = vmatpush2.msra.mxu0 0.0
      %1163 = vmatprep.subr.mxu0 0.0
      %1164 = vmatpush2.msra.mxu0 0.0
      %1165 = vmatprep.subr.mxu0 0.0
      %1166 = vmatpush2.msra.mxu0 0.0
      %1167 = vmatprep.subr.mxu0 0.0
      %1168 = vmatpush2.msra.mxu0 0.0
      %1169 = vmatprep.subr.mxu0 0.0
      %1170 = vmatpush2.msra.mxu0 0.0
      %1171 = vmatprep.mubr.f32.mxu0 0.0
      %1172 = vmatmul.mubr.f32.gmra.mxu0 %v1105
      %v1173 = vpop.f32.mrf.mxu0
      %v1174 = vadd.f32 0.0, %v1173
      %v1175 = vpop.f32.mrf.mxu0
      %1176 = vdwg.mxu0
      %s1177 = scalar_lea.vmem %s211, 40
      %v1178 = vld [vmem:[%s1177] sm:$0x7f]
      %v1179 = vmul.f32 %v1174, %v1178
      %v1180 = vadd.f32 %v1018, %v1179
      %v1181 = vmul.f32 %v1174, %v1174
      %v1182 = vadd.f32 %v1020, %v1181
      %v1183 = vmul.f32 %v1178, %v1178
      %v1184 = vadd.f32 %v1022, %v1183
      %v1185 = vmul.f32 %v1182, %v1184
      %v1186 = vrsqrt.pop %v1185
      %v1187 = vmul.f32 %v1185, %v1186
      %vm1188 = vcmp.eq.f32.partialorder %v1185, inf
      %v1189 = vsel %vm1188, %v1185, %v1187
      %vm1190 = vcmp.eq.f32.partialorder %v1185, 0.0
      %v1191 = vand.u32 %v1185, 2147483648
      %v1192 = vsel %vm1190, %v1191, %v1189
      %v1193 = vadd.f32 %v1192, 1e-12
      %v1194 = vrcp.pop %v1193
      %v1195 = vmul.f32 %v1180, %v1194
      %v1196 = vmax.f32 %v1195, -1.0
      %v1197 = vmin.f32 %v1196, 1.0
      %vm1198 = vcmask 55296
      %1199 = vst.msk [vmem:[%s215] sm:$0x7f] %vm1198, %v1197
      %p1200 = scmp.lt.s32.totalorder %s15, 1
      %s1201 = scalar_select %p1200, %s15, 1
      %s1202 = smul.addr %s1201, 8
      %s1203 = scalar_lea.vmem %s4, %s1202
      // Predicated region
      $region37: #{tpu_custom_call.1} parent=35 // pred_check
        %p1204 = pneg %p127
      $region38: #{tpu_custom_call.1} parent=35 // pred_check_branch
        %1206 = sbr.rel (%p1204) target = $region40
      $region39: #{tpu_custom_call.1} parent=35 // pred_region
        _
      $region40: #{tpu_custom_call.1} parent=35 // pred_fallthru
        _
    $region36: #{tpu_custom_call.1} parent=5 // pred_fallthru
      _
    %p1207 = scmp.le.s32.totalorder 2, %s10
    // Predicated region
    $region41: #{tpu_custom_call.1} parent=5 // pred_check
      %p1208 = pneg %p1207
    $region42: #{tpu_custom_call.1} parent=5 // pred_check_branch
      %1210 = sbr.rel (%p1208) target = $region44
    $region43: #{tpu_custom_call.1} parent=5 // pred_region
      %s1211 = ssub.s32 %s10, 2
      // Predicated region
      $region45: #{tpu_custom_call.1} parent=43 // pred_check
        %p1212 = pneg %p133
      $region46: #{tpu_custom_call.1} parent=43 // pred_check_branch
        %1214 = sbr.rel (%p1212) target = $region48
      $region47: #{tpu_custom_call.1} parent=43 // pred_region
        %p1215 = scmp.lt.s32.totalorder %s16, 1
        %s1216 = scalar_select %p1215, %s16, 1
        %s1217 = smul.addr %s1216, 8
        %s1218 = scalar_lea.vmem %s4, %s1217
      $region48: #{tpu_custom_call.1} parent=43 // pred_fallthru
        _
    $region44: #{tpu_custom_call.1} parent=5 // pred_fallthru
      _
  $region6: #{tpu_custom_call.1} parent=0 // loop_footer
    %s14 = sadd.s32 1, %s10
  $region7: #{tpu_custom_call.1} parent=0 // loop_footer_branch
    %9 = sbr.rel target = $region3
  $region8: #{tpu_custom_call.1} parent=0 // loop_exit
    _

</llo_original>
